<compile_context>
chip_gen: v6e
topology: v6e:2x2x1
jax: 0.10.0
libtpu: 0.0.40
codegen_flags: <defaults>
</compile_context>

<pallas_src>
import functools

import jax
import jax.numpy as jnp
import numpy as np
from jax.experimental import pallas as pl
from jax.experimental.pallas import tpu as pltpu


def _adaln_kernel(x_ref, scale_ref, shift_ref, o_ref, *, eps: float):
    """One T-tile: LayerNorm over the last dim, then a single fused FMA."""
    x = x_ref[...].astype(jnp.float32)                        # (tT, B, D)

    # Two-pass statistics (numerically robust; compute is free — HBM bound).
    mean = jnp.mean(x, axis=-1, keepdims=True)
    xc = x - mean
    var = jnp.mean(xc * xc, axis=-1, keepdims=True)
    xhat = xc * jax.lax.rsqrt(var + eps)

    # scale'/shift' already fold the LN affine and the FiLM modulation.
    out = xhat * scale_ref[...][None, :, :] + shift_ref[...][None, :, :]
    o_ref[...] = out.astype(o_ref.dtype)


def _vmem_capacity_bytes() -> int:
    """Physical VMEM of the local TPU; conservative fallback if unknown."""
    try:
        info = pltpu.get_tpu_info()
        cap = getattr(info, "vmem_capacity_bytes", None)
        if cap:
            return int(cap)
    except Exception:
        pass
    return 64 << 20  # assume the smallest (v7x-like) generation


def adaptive_layer_norm(x, cond, params, *, tile_t=None, eps: float = 1e-5,
                        out_dtype=None):
    """x: [T, B, D], cond: [B, Dc]  ->  [T, B, D] (out_dtype or x.dtype)."""
    T, B, D = x.shape
    out_dtype = x.dtype if out_dtype is None else out_dtype

    # ---- modulation MLP + affine folding (tiny; runs once per call in XLA) --
    h = (cond.astype(jnp.float32) @ params["w1"].astype(jnp.float32)
         + params["b1"].astype(jnp.float32))
    h = h * jax.nn.sigmoid(h)                                 # SiLU
    ss = h @ params["w2"].astype(jnp.float32) + params["b2"].astype(jnp.float32)
    scale, shift = ss[:, :D], ss[:, D:]                       # each (B, D)
    ln_w = params["ln_w"].astype(jnp.float32)                 # (1, D)
    ln_b = params["ln_b"].astype(jnp.float32)                 # (1, D)
    one_plus_scale = 1.0 + scale
    scale_p = ln_w * one_plus_scale                           # (B, D)
    shift_p = ln_b * one_plus_scale + shift                   # (B, D)

    # ---- per-generation tile / VMEM targets -------------------------------
    itemsize_in = x.dtype.itemsize
    itemsize_out = jnp.dtype(out_dtype).itemsize
    row_bytes_in = B * D * itemsize_in
    row_bytes_out = B * D * itemsize_out

    vmem_cap = _vmem_capacity_bytes()
    if vmem_cap <= (64 << 20):          # v7x-class: 64 MiB physical VMEM
        target_tile_bytes = 8 << 20     # ~8 MiB x-tile per grid step
        vmem_limit_cap = 48 << 20       # headroom for internal scratch
    else:                               # v5e / v6e: 128 MiB physical VMEM
        target_tile_bytes = 16 << 20
        vmem_limit_cap = 96 << 20
    headroom = 8 << 20

    def vmem_needed(tt: int) -> int:
        # Double-buffered pipeline tiles (in + out) ...
        pipeline = 2 * tt * (row_bytes_in + row_bytes_out)
        # ... plus tile-sized f32 intermediates inside the body
        # (upcast x, centered x / xhat, scaled product, pre-cast out).
        intermediates = 4 * tt * B * D * 4
        # ... plus the small double-buffered scale'/shift' tiles.
        params_buf = 4 * B * D * 4
        return pipeline + intermediates + params_buf

    # ---- tile sizing -------------------------------------------------------
    if tile_t is None:
        tile_t = max(1, target_tile_bytes // max(row_bytes_in, 1))
        # Guarantee a multi-step grid (>= ~8 steps) so double-buffering
        # overlaps DMA with compute and both v7x TensorCores get work.
        tile_t = min(tile_t, max(1, pl.cdiv(T, 8)))
    tile_t = int(max(1, min(int(tile_t), T)))
    # Shrink the tile (never silently clamp the limit) until it fits.
    while tile_t > 1 and vmem_needed(tile_t) + headroom > vmem_limit_cap:
        tile_t = max(1, tile_t // 2)

    vmem_limit = int(min(vmem_needed(tile_t) + headroom, vmem_limit_cap))
    vmem_limit = max(vmem_limit, 16 << 20)

    grid = (pl.cdiv(T, tile_t),)
    kernel = functools.partial(_adaln_kernel, eps=eps)

    # Advisory cost hint: bandwidth-bound, a handful of VPU ops per element.
    cost = pl.CostEstimate(
        flops=int(10 * T * B * D),
        transcendentals=int(T * B),           # one rsqrt per (t, b) row
        bytes_accessed=int(T * B * D * (itemsize_in + itemsize_out)
                           + 2 * B * D * 4),
    )

    # NOTE: with the test shape (B=8, D=128) the last two block dims are full
    # (8,128) vregs so stores are lane-dense and unmasked.  For shapes with
    # B < 8 or D % 128 != 0, a flattened [T*B, D] 2-D tiling would keep
    # stores unmasked (layout-only change; semantics identical).
    return pl.pallas_call(
        kernel,
        out_shape=jax.ShapeDtypeStruct((T, B, D), out_dtype),
        grid_spec=pltpu.PrefetchScalarGridSpec(
            num_scalar_prefetch=0,
            grid=grid,
            in_specs=[
                pl.BlockSpec((tile_t, B, D), lambda t: (t, 0, 0)),  # x tile
                pl.BlockSpec((B, D),         lambda t: (0, 0)),     # scale'
                pl.BlockSpec((B, D),         lambda t: (0, 0)),     # shift'
            ],
            out_specs=pl.BlockSpec((tile_t, B, D), lambda t: (t, 0, 0)),
        ),
        compiler_params=pltpu.CompilerParams(
            # T tiles are fully independent (no accumulator); on v7x verify in
            # the profile that both TCs run — if not, switch this axis to
            # pltpu.CORE_PARALLEL.
            dimension_semantics=("parallel",),
            vmem_limit_bytes=vmem_limit),
        cost_estimate=cost,
    )(x, scale_p, shift_p)


def init_params(key, feat_dim: int, condition_dim: int):
    """Deterministic synthetic parameters matching the module's shapes."""
    hidden = feat_dim // 2
    k1, k2, k3, k4 = jax.random.split(key, 4)
    return {
        # LayerNorm affine params (PyTorch init: ones / zeros)
        "ln_w": jnp.ones((1, feat_dim), jnp.float32),
        "ln_b": jnp.zeros((1, feat_dim), jnp.float32),
        # modulation_net: Linear(Dc, D//2) -> SiLU -> Linear(D//2, 2D)
        "w1": (jax.random.normal(k1, (condition_dim, hidden), jnp.float32)
               * (1.0 / np.sqrt(condition_dim))),
        "b1": (jax.random.normal(k2, (1, hidden), jnp.float32) * 0.01),
        "w2": (jax.random.normal(k3, (hidden, 2 * feat_dim), jnp.float32)
               * (1.0 / np.sqrt(hidden))),
        "b2": (jax.random.normal(k4, (1, 2 * feat_dim), jnp.float32) * 0.01),
    }


def reference(x, cond, params, eps=1e-5):
    """Pure-JAX reference reproducing the PyTorch forward."""
    mean = jnp.mean(x, axis=-1, keepdims=True)
    var = jnp.mean((x - mean) ** 2, axis=-1, keepdims=True)
    normed = (x - mean) / jnp.sqrt(var + eps)
    normed = normed * params["ln_w"][0] + params["ln_b"][0]
    h = cond @ params["w1"] + params["b1"]
    h = h * jax.nn.sigmoid(h)
    ss = h @ params["w2"] + params["b2"]                 # [B, 2D]
    D = x.shape[-1]
    scale, shift = ss[:, :D], ss[:, D:]
    return normed * (1.0 + scale)[None] + shift[None]


if __name__ == "__main__":
    T, B, D, Dc = 64, 8, 128, 32
    key = jax.random.PRNGKey(0)
    kx, kc, kp = jax.random.split(key, 3)

    x = jax.random.normal(kx, (T, B, D), jnp.float32)
    cond = jax.random.normal(kc, (B, Dc), jnp.float32)
    params = init_params(kp, feat_dim=D, condition_dim=Dc)

    ref = reference(x, cond, params)

    # Explicit small tile (multi-step grid exercising the parallel T axis).
    out_tiled = jax.block_until_ready(
        adaptive_layer_norm(x, cond, params, tile_t=16))
    np.testing.assert_allclose(np.asarray(out_tiled), np.asarray(ref),
                               rtol=1e-4, atol=1e-4)

    # Auto tile sizing: tile_t = min(target, cdiv(T, 8)) -> 8-step grid here,
    # so double-buffering overlaps DMA with compute even at small T.
    out_auto = jax.block_until_ready(adaptive_layer_norm(x, cond, params))
    np.testing.assert_allclose(np.asarray(out_auto), np.asarray(ref),
                               rtol=1e-4, atol=1e-4)

    print("KERNEL_OK")
</pallas_src>

<mosaic_0001>
module attributes {stable_mosaic.version = 11 : i64} {
  func.func @_adaln_kernel(%arg0: i32, %arg1: memref<16x8x128xf32, #tpu.memory_space<vmem>>, %arg2: memref<8x128xf32, #tpu.memory_space<vmem>>, %arg3: memref<8x128xf32, #tpu.memory_space<vmem>>, %arg4: memref<16x8x128xf32, #tpu.memory_space<vmem>>) attributes {dimension_semantics = [#tpu.dimension_semantics<parallel>], iteration_bounds = array<i64: 4>, scalar_prefetch = 0 : i64, scratch_operands = 0 : i64, tpu.core_type = #tpu.core_type<tc>, window_params = [{transform_indices = @transform_0, window_bounds = array<i64: 16, 8, 128>}, {pipeline_mode = #tpu.pipeline_mode<synchronous>, transform_indices = @transform_1, window_bounds = array<i64: 8, 128>}, {pipeline_mode = #tpu.pipeline_mode<synchronous>, transform_indices = @transform_2, window_bounds = array<i64: 8, 128>}, {transform_indices = @transform_3, window_bounds = array<i64: 16, 8, 128>}]} {
    %c0 = arith.constant 0 : index
    %c0_0 = arith.constant 0 : index
    %c0_1 = arith.constant 0 : index
    %0 = vector.load %arg1[%c0, %c0_0, %c0_1] : memref<16x8x128xf32, #tpu.memory_space<vmem>>, vector<16x8x128xf32>
    %cst = arith.constant dense<0.000000e+00> : vector<16x8xf32>
    %1 = vector.multi_reduction <add>, %0, %cst [2] : vector<16x8x128xf32> to vector<16x8xf32>
    %2 = vector.shape_cast %1 : vector<16x8xf32> to vector<16x8x1xf32>
    %cst_2 = arith.constant 1.280000e+02 : f32
    %3 = vector.broadcast %cst_2 : f32 to vector<16x8x1xf32>
    %4 = arith.divf %2, %3 : vector<16x8x1xf32>
    %5 = vector.broadcast %4 : vector<16x8x1xf32> to vector<16x8x128xf32>
    %6 = arith.subf %0, %5 : vector<16x8x128xf32>
    %7 = arith.mulf %6, %6 : vector<16x8x128xf32>
    %cst_3 = arith.constant dense<0.000000e+00> : vector<16x8xf32>
    %8 = vector.multi_reduction <add>, %7, %cst_3 [2] : vector<16x8x128xf32> to vector<16x8xf32>
    %9 = vector.shape_cast %8 : vector<16x8xf32> to vector<16x8x1xf32>
    %cst_4 = arith.constant 1.280000e+02 : f32
    %10 = vector.broadcast %cst_4 : f32 to vector<16x8x1xf32>
    %11 = arith.divf %9, %10 : vector<16x8x1xf32>
    %cst_5 = arith.constant 9.99999974E-6 : f32
    %12 = vector.broadcast %cst_5 : f32 to vector<16x8x1xf32>
    %13 = arith.addf %11, %12 : vector<16x8x1xf32>
    %14 = math.rsqrt %13 : vector<16x8x1xf32>
    %15 = vector.broadcast %14 : vector<16x8x1xf32> to vector<16x8x128xf32>
    %16 = arith.mulf %6, %15 : vector<16x8x128xf32>
    %c0_6 = arith.constant 0 : index
    %c0_7 = arith.constant 0 : index
    %17 = vector.load %arg2[%c0_6, %c0_7] : memref<8x128xf32, #tpu.memory_space<vmem>>, vector<8x128xf32>
    %18 = vector.shape_cast %17 : vector<8x128xf32> to vector<1x8x128xf32>
    %19 = vector.broadcast %18 : vector<1x8x128xf32> to vector<16x8x128xf32>
    %20 = arith.mulf %16, %19 : vector<16x8x128xf32>
    %c0_8 = arith.constant 0 : index
    %c0_9 = arith.constant 0 : index
    %21 = vector.load %arg3[%c0_8, %c0_9] : memref<8x128xf32, #tpu.memory_space<vmem>>, vector<8x128xf32>
    %22 = vector.shape_cast %21 : vector<8x128xf32> to vector<1x8x128xf32>
    %23 = vector.broadcast %22 : vector<1x8x128xf32> to vector<16x8x128xf32>
    %24 = arith.addf %20, %23 : vector<16x8x128xf32>
    %c0_10 = arith.constant 0 : index
    %c0_11 = arith.constant 0 : index
    %c0_12 = arith.constant 0 : index
    %25 = vector.load %arg4[%c0_10, %c0_11, %c0_12] : memref<16x8x128xf32, #tpu.memory_space<vmem>>, vector<16x8x128xf32>
    tpu.vector_store %arg4[%c0_10, %c0_11, %c0_12], %24 {strides = array<i32>} : memref<16x8x128xf32, #tpu.memory_space<vmem>>, vector<16x8x128xf32>,
    return
  }
  func.func @transform_0(%arg0: i32) -> (i32, i32, i32) {
    %c0_i32 = arith.constant 0 : i32
    %c0_i32_0 = arith.constant 0 : i32
    %c0_i32_1 = arith.constant 0 : i32
    return %arg0, %c0_i32, %c0_i32_0 : i32, i32, i32
  }
  func.func @transform_1(%arg0: i32) -> (i32, i32) {
    %c0_i32 = arith.constant 0 : i32
    %c0_i32_0 = arith.constant 0 : i32
    %c0_i32_1 = arith.constant 0 : i32
    return %c0_i32, %c0_i32_0 : i32, i32
  }
  func.func @transform_2(%arg0: i32) -> (i32, i32) {
    %c0_i32 = arith.constant 0 : i32
    %c0_i32_0 = arith.constant 0 : i32
    %c0_i32_1 = arith.constant 0 : i32
    return %c0_i32, %c0_i32_0 : i32, i32
  }
  func.func @transform_3(%arg0: i32) -> (i32, i32, i32) {
    %c0_i32 = arith.constant 0 : i32
    %c0_i32_0 = arith.constant 0 : i32
    %c0_i32_1 = arith.constant 0 : i32
    return %arg0, %c0_i32, %c0_i32_0 : i32, i32, i32
  }
}

</mosaic_0001>

<llo_original>
// kernel: tpu_custom_call.1
$region0: #{tpu_custom_call.1}
  #allocation0 [shape = 'u32[]', space=smem, size = 0x4, offset = 0x4, fixed_abs, tag = 'smem constant byte address 0x4 - core index']
  #allocation1 [shape = 'u32[144,128]{1,0:T(1,128)}', space=vmem, size = 0x12000, scoped, tag = 'internal scratch']
  %s0 = inlined_call_operand.hbm [shape: f32[64,8,128], index: 0, kind: input, shape index: {}]
  %s1 = inlined_call_operand.hbm [shape: f32[8,128], index: 1, kind: input, shape index: {}]
  %s2 = inlined_call_operand.hbm [shape: f32[8,128], index: 2, kind: input, shape index: {}]
  %s3 = inlined_call_operand.hbm [shape: f32[64,8,128], index: 3, kind: output, shape index: {}]
  %s4 = sld [smem:[#allocation0]]
  $region57: #{tpu_custom_call.1} parent=0
    _
  %s6 = ssub.s32 1, %s4
  %s7 = scalar_select 0, %s6, %s4
  $region1: #{tpu_custom_call.1} parent=0
    #allocation2 [shape = 'u8[131072]{0}', space=vmem, size = 0x20000, scoped, tag = 'input window, operand 0']
    #allocation3 [shape = 's32[2]{0}', space=sflag, size = 0x8, scoped, tag = 'scoped memory for tpu_custom_call.1']
    #allocation4 [shape = 's32[2]{0}', space=sflag, size = 0x8, scoped, tag = 'scoped memory for tpu_custom_call.1']
    #allocation5 [shape = 'u8[4096]{0}', space=vmem, size = 0x1000, scoped, tag = 'input window, operand 1, single buffered']
    #allocation6 [shape = 's32[1]{0}', space=sflag, size = 0x4, scoped, tag = 'scoped memory for tpu_custom_call.1']
    #allocation7 [shape = 'u8[4096]{0}', space=vmem, size = 0x1000, scoped, tag = 'input window, operand 2, single buffered']
    #allocation8 [shape = 'u8[131072]{0}', space=vmem, size = 0x20000, scoped, tag = 'output window, operand 0']
    %8 = vsyncpa [#allocation3], 0
    %s9 = scalar_lea.sflag [#allocation3], 1
    %10 = vsyncpa %s9, 0
    %11 = vsyncpa [#allocation6], 0
    %12 = vsyncpa [#allocation4], 0
    %s13 = scalar_lea.sflag [#allocation4], 1
    %14 = vsyncpa %s13, 0
    loop: start=0, step=1, limit=6
    $region2: #{tpu_custom_call.1} parent=1 // loop_pre_header
      _
    $region3: #{tpu_custom_call.1} parent=1 // loop_header
      %s16 = sphi 0, %s20
      %p17 = scmp.ge.s32.totalorder %s16, 6
      %s26 = sphi 0, %s28
      %s29 = sphi 0, %s26
      %s30 = sphi 0, %s29
      %s46 = sphi 0, %s30
      %s50 = sphi 0, %s50
      %s52 = sphi 0, %s50
      %s53 = sphi 0, %s52
      %s67 = sphi 0, %s53
      %s71 = sphi 0, %s71
      %s73 = sphi 0, %s71
      %s74 = sphi 0, %s73
      %s88 = sphi 0, %s74
      %s94 = sphi 0, %s96
      %s97 = sphi 0, %s94
      %s98 = sphi 0, %s97
      %s114 = sphi 0, %s98
    $region4: #{tpu_custom_call.1} parent=1 // loop_header_branch
      %19 = sbr.rel (%p17) target = $region8
    $region5: #{tpu_custom_call.1} parent=1 // loop_body
      %s21 = ssub.s32 %s16, 1
      %s22 = ssub.s32 %s16, 2
      %s23 = sadd.s32 %s16, 1
      %s24 = ssub.s32 %s16, %s23
      %p25 = scmp.eq.s32.totalorder %s24, 0
      %s27 = sadd.s32 %s26, 1
      %s28 = scalar_select %p25, %s26, %s27
      %p31 = pneg %p25
      %p32 = scmp.eq.s32.totalorder %s16, 3
      %p33 = por %p31, %p32
      %p34 = scmp.ne.s32.totalorder %s26, %s29
      %p35 = scmp.eq.s32.totalorder %s16, 0
      %p36 = por %p34, %p35
      %p37 = scmp.ne.s32.totalorder %s26, %s29
      %p38 = scmp.eq.s32.totalorder %s21, 3
      %p39 = por %p37, %p38
      %p40 = scmp.ne.s32.totalorder %s29, %s30
      %p41 = scmp.eq.s32.totalorder %s21, 0
      %p42 = por %p40, %p41
      %p43 = scmp.ne.s32.totalorder %s29, %s30
      %p44 = scmp.eq.s32.totalorder %s22, 3
      %p45 = por %p43, %p44
      %p47 = scmp.ne.s32.totalorder %s30, %s46
      %p48 = scmp.eq.s32.totalorder %s22, 0
      %p49 = por %p47, %p48
      %s51 = sadd.s32 %s50, 1
      %p54 = scmp.eq.s32.totalorder %s16, 3
      %p55 = scmp.ne.s32.totalorder %s50, %s52
      %p56 = scmp.eq.s32.totalorder %s16, 0
      %p57 = por %p55, %p56
      %p58 = scmp.ne.s32.totalorder %s50, %s52
      %p59 = scmp.eq.s32.totalorder %s21, 3
      %p60 = por %p58, %p59
      %p61 = scmp.ne.s32.totalorder %s52, %s53
      %p62 = scmp.eq.s32.totalorder %s21, 0
      %p63 = por %p61, %p62
      %p64 = scmp.ne.s32.totalorder %s52, %s53
      %p65 = scmp.eq.s32.totalorder %s22, 3
      %p66 = por %p64, %p65
      %p68 = scmp.ne.s32.totalorder %s53, %s67
      %p69 = scmp.eq.s32.totalorder %s22, 0
      %p70 = por %p68, %p69
      %s72 = sadd.s32 %s71, 1
      %p75 = scmp.eq.s32.totalorder %s16, 3
      %p76 = scmp.ne.s32.totalorder %s71, %s73
      %p77 = scmp.eq.s32.totalorder %s16, 0
      %p78 = por %p76, %p77
      %p79 = scmp.ne.s32.totalorder %s71, %s73
      %p80 = scmp.eq.s32.totalorder %s21, 3
      %p81 = por %p79, %p80
      %p82 = scmp.ne.s32.totalorder %s73, %s74
      %p83 = scmp.eq.s32.totalorder %s21, 0
      %p84 = por %p82, %p83
      %p85 = scmp.ne.s32.totalorder %s73, %s74
      %p86 = scmp.eq.s32.totalorder %s22, 3
      %p87 = por %p85, %p86
      %p89 = scmp.ne.s32.totalorder %s74, %s88
      %p90 = scmp.eq.s32.totalorder %s22, 0
      %p91 = por %p89, %p90
      %s92 = ssub.s32 %s16, %s23
      %p93 = scmp.eq.s32.totalorder %s92, 0
      %s95 = sadd.s32 %s94, 1
      %s96 = scalar_select %p93, %s94, %s95
      %p99 = pneg %p93
      %p100 = scmp.eq.s32.totalorder %s16, 3
      %p101 = por %p99, %p100
      %p102 = scmp.ne.s32.totalorder %s94, %s97
      %p103 = scmp.eq.s32.totalorder %s16, 0
      %p104 = por %p102, %p103
      %p105 = scmp.ne.s32.totalorder %s94, %s97
      %p106 = scmp.eq.s32.totalorder %s21, 3
      %p107 = por %p105, %p106
      %p108 = scmp.ne.s32.totalorder %s97, %s98
      %p109 = scmp.eq.s32.totalorder %s21, 0
      %p110 = por %p108, %p109
      %p111 = scmp.ne.s32.totalorder %s97, %s98
      %p112 = scmp.eq.s32.totalorder %s22, 3
      %p113 = por %p111, %p112
      %p115 = scmp.ne.s32.totalorder %s98, %s114
      %p116 = scmp.eq.s32.totalorder %s22, 0
      %p117 = por %p115, %p116
      %p118 = scmp.le.s32.totalorder 1, %s16
      %p119 = scmp.lt.s32.totalorder %s16, 5
      %p120 = pnand %p118, %p119
      %p121 = pneg %p120
      // Predicated region
      $region9: #{tpu_custom_call.1} parent=5 // pred_check
        _
      $region10: #{tpu_custom_call.1} parent=5 // pred_check_branch
        %123 = sbr.rel (%p120) target = $region12
      $region11: #{tpu_custom_call.1} parent=5 // pred_region
        %s124 = ssub.s32 %s16, 1
        // Predicated region
        $region13: #{tpu_custom_call.1} parent=11 // pred_check
          %p125 = pneg %p63
        $region14: #{tpu_custom_call.1} parent=11 // pred_check_branch
          %127 = sbr.rel (%p125) target = $region16
        $region15: #{tpu_custom_call.1} parent=11 // pred_region
          %s129 = ssub.s32 128, 128
          %130 = vsyncadd [#allocation6], %s129
          %s132 = sshll.u32 [#allocation5], 4
          %s133 = int_to_ptr.vmem [resolvable:$true] %s132
          %135 = dma.hbm_to_vmem [thread:$0]  %s1, 128, %s133, [#allocation6]
        $region16: #{tpu_custom_call.1} parent=11 // pred_fallthru
          _
        // Predicated region
        $region17: #{tpu_custom_call.1} parent=11 // pred_check
          %p136 = pneg %p84
        $region18: #{tpu_custom_call.1} parent=11 // pred_check_branch
          %138 = sbr.rel (%p136) target = $region20
        $region19: #{tpu_custom_call.1} parent=11 // pred_region
          %s140 = ssub.s32 128, 128
          %141 = vsyncadd [#allocation6], %s140
          %s143 = sshll.u32 [#allocation7], 4
          %s144 = int_to_ptr.vmem [resolvable:$true] %s143
          %146 = dma.hbm_to_vmem [thread:$0]  %s2, 128, %s144, [#allocation6]
        $region20: #{tpu_custom_call.1} parent=11 // pred_fallthru
          _
      $region12: #{tpu_custom_call.1} parent=5 // pred_fallthru
        _
      %p147 = scmp.lt.s32.totalorder %s16, 4
      // Predicated region
      $region21: #{tpu_custom_call.1} parent=5 // pred_check
        %p148 = pneg %p147
      $region22: #{tpu_custom_call.1} parent=5 // pred_check_branch
        %150 = sbr.rel (%p148) target = $region24
      $region23: #{tpu_custom_call.1} parent=5 // pred_region
        // Predicated region
        $region25: #{tpu_custom_call.1} parent=23 // pred_check
          %p151 = pneg %p36
        $region26: #{tpu_custom_call.1} parent=23 // pred_check_branch
          %153 = sbr.rel (%p151) target = $region28
        $region27: #{tpu_custom_call.1} parent=23 // pred_region
          %s154 = sand.u32 %s26, 1
          %s155 = scalar_lea.sflag [#allocation3], %s154
          %s156 = sand.u32 %s26, 1
          %s157 = smul.addr %s156, 128
          %s158 = scalar_lea.vmem [#allocation2], %s157
          %s159 = smul.u32 16, %s16
          %s161 = ssub.s32 2048, 2048
          %162 = vsyncadd %s155, %s161
          %s163 = smul.addr %s159, 128
          %s164 = scalar_lea.hbm %s0, %s163
          %s165 = sshll.u32 %s158, 4
          %s166 = int_to_ptr.vmem [resolvable:$true] %s165
          %171 = dma.hbm_to_vmem [thread:$0]  %s164, 2048, %s166, %s155, 128, 128, 8
        $region28: #{tpu_custom_call.1} parent=23 // pred_fallthru
          _
      $region24: #{tpu_custom_call.1} parent=5 // pred_fallthru
        _
      %p172 = scmp.le.s32.totalorder 1, %s16
      %p173 = scmp.lt.s32.totalorder %s16, 5
      %p174 = pnand %p172, %p173
      %p175 = pneg %p174
      // Predicated region
      $region29: #{tpu_custom_call.1} parent=5 // pred_check
        _
      $region30: #{tpu_custom_call.1} parent=5 // pred_check_branch
        %177 = sbr.rel (%p174) target = $region32
      $region31: #{tpu_custom_call.1} parent=5 // pred_region
        %s178 = ssub.s32 %s16, 1
        %s179 = sand.u32 %s29, 1
        %s180 = scalar_lea.sflag [#allocation3], %s179
        %s181 = sand.u32 %s29, 1
        %s182 = smul.addr %s181, 128
        %s183 = scalar_lea.vmem [#allocation2], %s182
        // Predicated region
        $region33: #{tpu_custom_call.1} parent=31 // pred_check
          %p184 = pneg %p42
        $region34: #{tpu_custom_call.1} parent=31 // pred_check_branch
          %186 = sbr.rel (%p184) target = $region36
        $region35: #{tpu_custom_call.1} parent=31 // pred_region
          %187 = dma.done %s180, 2048
        $region36: #{tpu_custom_call.1} parent=31 // pred_fallthru
          _
        // Predicated region
        $region37: #{tpu_custom_call.1} parent=31 // pred_check
          %p188 = pneg %p63
        $region38: #{tpu_custom_call.1} parent=31 // pred_check_branch
          %190 = sbr.rel (%p188) target = $region40
        $region39: #{tpu_custom_call.1} parent=31 // pred_region
          %191 = dma.done [#allocation6], 128
        $region40: #{tpu_custom_call.1} parent=31 // pred_fallthru
          _
        // Predicated region
        $region41: #{tpu_custom_call.1} parent=31 // pred_check
          %p192 = pneg %p84
        $region42: #{tpu_custom_call.1} parent=31 // pred_check_branch
          %194 = sbr.rel (%p192) target = $region44
        $region43: #{tpu_custom_call.1} parent=31 // pred_region
          %195 = dma.done [#allocation6], 128
        $region44: #{tpu_custom_call.1} parent=31 // pred_fallthru
          _
        %s196 = sand.u32 %s29, 1
        %s197 = scalar_lea.sflag [#allocation3], %s196
        %s198 = sand.u32 %s29, 1
        %s199 = smul.addr %s198, 128
        %s200 = scalar_lea.vmem [#allocation2], %s199
        %p201 = pneg %p42
        %p202 = pneg %p39
        %p203 = pneg %p63
        %p204 = pneg %p60
        %p205 = pneg %p84
        %p206 = pneg %p81
        %p207 = pneg %p110
        %p208 = pneg %p107
        %s209 = sand.u32 %s97, 1
        %s210 = scalar_lea.sflag [#allocation4], %s209
        %s211 = sand.u32 %s97, 1
        %s212 = smul.addr %s211, 128
        %s213 = scalar_lea.vmem [#allocation8], %s212
        %s214 = smul.u32 16, %s21
        %s215 = smul.u32 16, %s21
        %v216 = vld [vmem:[%s183] sm:$0xff]
        %v217 = vld [vmem:[%s183 + $0x8] sm:$0xff]
        %v218 = vld [vmem:[%s183 + $0x10] sm:$0xff]
        %v219 = vld [vmem:[%s183 + $0x18] sm:$0xff]
        %v220 = vld [vmem:[%s183 + $0x20] sm:$0xff]
        %v221 = vld [vmem:[%s183 + $0x28] sm:$0xff]
        %v222 = vld [vmem:[%s183 + $0x30] sm:$0xff]
        %v223 = vld [vmem:[%s183 + $0x38] sm:$0xff]
        %v224 = vld [vmem:[%s183 + $0x40] sm:$0xff]
        %v225 = vld [vmem:[%s183 + $0x48] sm:$0xff]
        %v226 = vld [vmem:[%s183 + $0x50] sm:$0xff]
        %v227 = vld [vmem:[%s183 + $0x58] sm:$0xff]
        %v228 = vld [vmem:[%s183 + $0x60] sm:$0xff]
        %v229 = vld [vmem:[%s183 + $0x68] sm:$0xff]
        %v230 = vld [vmem:[%s183 + $0x70] sm:$0xff]
        %v231 = vld [vmem:[%s183 + $0x78] sm:$0xff]
        %232 = vadd.xlane.f32.xlu0 %v216
        %v233 = vpop.xlane.xlu0 %232
        %234 = vadd.xlane.f32.xlu0 %v217
        %v235 = vpop.xlane.xlu0 %234
        %236 = vadd.xlane.f32.xlu0 %v218
        %v237 = vpop.xlane.xlu0 %236
        %238 = vadd.xlane.f32.xlu0 %v219
        %v239 = vpop.xlane.xlu0 %238
        %240 = vadd.xlane.f32.xlu0 %v220
        %v241 = vpop.xlane.xlu0 %240
        %242 = vadd.xlane.f32.xlu0 %v221
        %v243 = vpop.xlane.xlu0 %242
        %244 = vadd.xlane.f32.xlu0 %v222
        %v245 = vpop.xlane.xlu0 %244
        %246 = vadd.xlane.f32.xlu0 %v223
        %v247 = vpop.xlane.xlu0 %246
        %248 = vadd.xlane.f32.xlu0 %v224
        %v249 = vpop.xlane.xlu0 %248
        %250 = vadd.xlane.f32.xlu0 %v225
        %v251 = vpop.xlane.xlu0 %250
        %252 = vadd.xlane.f32.xlu0 %v226
        %v253 = vpop.xlane.xlu0 %252
        %254 = vadd.xlane.f32.xlu0 %v227
        %v255 = vpop.xlane.xlu0 %254
        %256 = vadd.xlane.f32.xlu0 %v228
        %v257 = vpop.xlane.xlu0 %256
        %258 = vadd.xlane.f32.xlu0 %v229
        %v259 = vpop.xlane.xlu0 %258
        %260 = vadd.xlane.f32.xlu0 %v230
        %v261 = vpop.xlane.xlu0 %260
        %262 = vadd.xlane.f32.xlu0 %v231
        %v263 = vpop.xlane.xlu0 %262
        %v264 = vrcp.pop 128.0
        %v265 = vmul.f32 %v233, %v264
        %v266 = vmul.f32 %v235, %v264
        %v267 = vmul.f32 %v237, %v264
        %v268 = vmul.f32 %v239, %v264
        %v269 = vmul.f32 %v241, %v264
        %v270 = vmul.f32 %v243, %v264
        %v271 = vmul.f32 %v245, %v264
        %v272 = vmul.f32 %v247, %v264
        %v273 = vmul.f32 %v249, %v264
        %v274 = vmul.f32 %v251, %v264
        %v275 = vmul.f32 %v253, %v264
        %v276 = vmul.f32 %v255, %v264
        %v277 = vmul.f32 %v257, %v264
        %v278 = vmul.f32 %v259, %v264
        %v279 = vmul.f32 %v261, %v264
        %v280 = vmul.f32 %v263, %v264
        %v281 = vsub.f32 %v216, %v265
        %v282 = vsub.f32 %v217, %v266
        %v283 = vsub.f32 %v218, %v267
        %v284 = vsub.f32 %v219, %v268
        %v285 = vsub.f32 %v220, %v269
        %v286 = vsub.f32 %v221, %v270
        %v287 = vsub.f32 %v222, %v271
        %v288 = vsub.f32 %v223, %v272
        %v289 = vsub.f32 %v224, %v273
        %v290 = vsub.f32 %v225, %v274
        %v291 = vsub.f32 %v226, %v275
        %v292 = vsub.f32 %v227, %v276
        %v293 = vsub.f32 %v228, %v277
        %v294 = vsub.f32 %v229, %v278
        %v295 = vsub.f32 %v230, %v279
        %v296 = vsub.f32 %v231, %v280
        %v297 = vmul.f32 %v281, %v281
        %v298 = vmul.f32 %v282, %v282
        %v299 = vmul.f32 %v283, %v283
        %v300 = vmul.f32 %v284, %v284
        %v301 = vmul.f32 %v285, %v285
        %v302 = vmul.f32 %v286, %v286
        %v303 = vmul.f32 %v287, %v287
        %v304 = vmul.f32 %v288, %v288
        %v305 = vmul.f32 %v289, %v289
        %v306 = vmul.f32 %v290, %v290
        %v307 = vmul.f32 %v291, %v291
        %v308 = vmul.f32 %v292, %v292
        %v309 = vmul.f32 %v293, %v293
        %v310 = vmul.f32 %v294, %v294
        %v311 = vmul.f32 %v295, %v295
        %v312 = vmul.f32 %v296, %v296
        %313 = vadd.xlane.f32.xlu0 %v297
        %v314 = vpop.xlane.xlu0 %313
        %315 = vadd.xlane.f32.xlu0 %v298
        %v316 = vpop.xlane.xlu0 %315
        %317 = vadd.xlane.f32.xlu0 %v299
        %v318 = vpop.xlane.xlu0 %317
        %319 = vadd.xlane.f32.xlu0 %v300
        %v320 = vpop.xlane.xlu0 %319
        %321 = vadd.xlane.f32.xlu0 %v301
        %v322 = vpop.xlane.xlu0 %321
        %323 = vadd.xlane.f32.xlu0 %v302
        %v324 = vpop.xlane.xlu0 %323
        %325 = vadd.xlane.f32.xlu0 %v303
        %v326 = vpop.xlane.xlu0 %325
        %327 = vadd.xlane.f32.xlu0 %v304
        %v328 = vpop.xlane.xlu0 %327
        %329 = vadd.xlane.f32.xlu0 %v305
        %v330 = vpop.xlane.xlu0 %329
        %331 = vadd.xlane.f32.xlu0 %v306
        %v332 = vpop.xlane.xlu0 %331
        %333 = vadd.xlane.f32.xlu0 %v307
        %v334 = vpop.xlane.xlu0 %333
        %335 = vadd.xlane.f32.xlu0 %v308
        %v336 = vpop.xlane.xlu0 %335
        %337 = vadd.xlane.f32.xlu0 %v309
        %v338 = vpop.xlane.xlu0 %337
        %339 = vadd.xlane.f32.xlu0 %v310
        %v340 = vpop.xlane.xlu0 %339
        %341 = vadd.xlane.f32.xlu0 %v311
        %v342 = vpop.xlane.xlu0 %341
        %343 = vadd.xlane.f32.xlu0 %v312
        %v344 = vpop.xlane.xlu0 %343
        %v345 = vmul.f32 %v314, %v264
        %v346 = vmul.f32 %v316, %v264
        %v347 = vmul.f32 %v318, %v264
        %v348 = vmul.f32 %v320, %v264
        %v349 = vmul.f32 %v322, %v264
        %v350 = vmul.f32 %v324, %v264
        %v351 = vmul.f32 %v326, %v264
        %v352 = vmul.f32 %v328, %v264
        %v353 = vmul.f32 %v330, %v264
        %v354 = vmul.f32 %v332, %v264
        %v355 = vmul.f32 %v334, %v264
        %v356 = vmul.f32 %v336, %v264
        %v357 = vmul.f32 %v338, %v264
        %v358 = vmul.f32 %v340, %v264
        %v359 = vmul.f32 %v342, %v264
        %v360 = vmul.f32 %v344, %v264
        %v361 = vadd.f32 %v345, 1e-05
        %v362 = vadd.f32 %v346, 1e-05
        %v363 = vadd.f32 %v347, 1e-05
        %v364 = vadd.f32 %v348, 1e-05
        %v365 = vadd.f32 %v349, 1e-05
        %v366 = vadd.f32 %v350, 1e-05
        %v367 = vadd.f32 %v351, 1e-05
        %v368 = vadd.f32 %v352, 1e-05
        %v369 = vadd.f32 %v353, 1e-05
        %v370 = vadd.f32 %v354, 1e-05
        %v371 = vadd.f32 %v355, 1e-05
        %v372 = vadd.f32 %v356, 1e-05
        %v373 = vadd.f32 %v357, 1e-05
        %v374 = vadd.f32 %v358, 1e-05
        %v375 = vadd.f32 %v359, 1e-05
        %v376 = vadd.f32 %v360, 1e-05
        %v377 = vrsqrt.pop %v361
        %v378 = vrsqrt.pop %v362
        %v379 = vrsqrt.pop %v363
        %v380 = vrsqrt.pop %v364
        %v381 = vrsqrt.pop %v365
        %v382 = vrsqrt.pop %v366
        %v383 = vrsqrt.pop %v367
        %v384 = vrsqrt.pop %v368
        %v385 = vrsqrt.pop %v369
        %v386 = vrsqrt.pop %v370
        %v387 = vrsqrt.pop %v371
        %v388 = vrsqrt.pop %v372
        %v389 = vrsqrt.pop %v373
        %v390 = vrsqrt.pop %v374
        %v391 = vrsqrt.pop %v375
        %v392 = vrsqrt.pop %v376
        %v393 = vmul.f32 %v281, %v377
        %v394 = vmul.f32 %v282, %v378
        %v395 = vmul.f32 %v283, %v379
        %v396 = vmul.f32 %v284, %v380
        %v397 = vmul.f32 %v285, %v381
        %v398 = vmul.f32 %v286, %v382
        %v399 = vmul.f32 %v287, %v383
        %v400 = vmul.f32 %v288, %v384
        %v401 = vmul.f32 %v289, %v385
        %v402 = vmul.f32 %v290, %v386
        %v403 = vmul.f32 %v291, %v387
        %v404 = vmul.f32 %v292, %v388
        %v405 = vmul.f32 %v293, %v389
        %v406 = vmul.f32 %v294, %v390
        %v407 = vmul.f32 %v295, %v391
        %v408 = vmul.f32 %v296, %v392
        %v409 = vld [vmem:[#allocation5] sm:$0xff]
        %v410 = vmul.f32 %v393, %v409
        %v411 = vmul.f32 %v394, %v409
        %v412 = vmul.f32 %v395, %v409
        %v413 = vmul.f32 %v396, %v409
        %v414 = vmul.f32 %v397, %v409
        %v415 = vmul.f32 %v398, %v409
        %v416 = vmul.f32 %v399, %v409
        %v417 = vmul.f32 %v400, %v409
        %v418 = vmul.f32 %v401, %v409
        %v419 = vmul.f32 %v402, %v409
        %v420 = vmul.f32 %v403, %v409
        %v421 = vmul.f32 %v404, %v409
        %v422 = vmul.f32 %v405, %v409
        %v423 = vmul.f32 %v406, %v409
        %v424 = vmul.f32 %v407, %v409
        %v425 = vmul.f32 %v408, %v409
        %v426 = vld [vmem:[#allocation7] sm:$0xff]
        %v427 = vadd.f32 %v410, %v426
        %v428 = vadd.f32 %v411, %v426
        %v429 = vadd.f32 %v412, %v426
        %v430 = vadd.f32 %v413, %v426
        %v431 = vadd.f32 %v414, %v426
        %v432 = vadd.f32 %v415, %v426
        %v433 = vadd.f32 %v416, %v426
        %v434 = vadd.f32 %v417, %v426
        %v435 = vadd.f32 %v418, %v426
        %v436 = vadd.f32 %v419, %v426
        %v437 = vadd.f32 %v420, %v426
        %v438 = vadd.f32 %v421, %v426
        %v439 = vadd.f32 %v422, %v426
        %v440 = vadd.f32 %v423, %v426
        %v441 = vadd.f32 %v424, %v426
        %v442 = vadd.f32 %v425, %v426
        %443 = vst [vmem:[%s213] sm:$0xff] %v427
        %444 = vst [vmem:[%s213 + $0x8] sm:$0xff] %v428
        %445 = vst [vmem:[%s213 + $0x10] sm:$0xff] %v429
        %446 = vst [vmem:[%s213 + $0x18] sm:$0xff] %v430
        %447 = vst [vmem:[%s213 + $0x20] sm:$0xff] %v431
        %448 = vst [vmem:[%s213 + $0x28] sm:$0xff] %v432
        %449 = vst [vmem:[%s213 + $0x30] sm:$0xff] %v433
        %450 = vst [vmem:[%s213 + $0x38] sm:$0xff] %v434
        %451 = vst [vmem:[%s213 + $0x40] sm:$0xff] %v435
        %452 = vst [vmem:[%s213 + $0x48] sm:$0xff] %v436
        %453 = vst [vmem:[%s213 + $0x50] sm:$0xff] %v437
        %454 = vst [vmem:[%s213 + $0x58] sm:$0xff] %v438
        %455 = vst [vmem:[%s213 + $0x60] sm:$0xff] %v439
        %456 = vst [vmem:[%s213 + $0x68] sm:$0xff] %v440
        %457 = vst [vmem:[%s213 + $0x70] sm:$0xff] %v441
        %458 = vst [vmem:[%s213 + $0x78] sm:$0xff] %v442
        %s459 = sand.u32 %s97, 1
        %s460 = scalar_lea.sflag [#allocation4], %s459
        %s461 = sand.u32 %s97, 1
        %s462 = smul.addr %s461, 128
        %s463 = scalar_lea.vmem [#allocation8], %s462
        // Predicated region
        $region45: #{tpu_custom_call.1} parent=31 // pred_check
          %p464 = pneg %p107
        $region46: #{tpu_custom_call.1} parent=31 // pred_check_branch
          %466 = sbr.rel (%p464) target = $region48
        $region47: #{tpu_custom_call.1} parent=31 // pred_region
          %s467 = smul.u32 16, %s21
          %s469 = ssub.s32 2048, 2048
          %470 = vsyncadd %s460, %s469
          %s471 = smul.addr %s467, 128
          %s472 = scalar_lea.hbm %s3, %s471
          %s473 = sshll.u32 %s463, 4
          %s474 = int_to_ptr.vmem [resolvable:$true] %s473
          %479 = dma.vmem_to_hbm [thread:$0]  %s474, 2048, %s472, %s460, 128, 128, 8
        $region48: #{tpu_custom_call.1} parent=31 // pred_fallthru
          _
      $region32: #{tpu_custom_call.1} parent=5 // pred_fallthru
        _
      %p480 = scmp.le.s32.totalorder 2, %s16
      // Predicated region
      $region49: #{tpu_custom_call.1} parent=5 // pred_check
        %p481 = pneg %p480
      $region50: #{tpu_custom_call.1} parent=5 // pred_check_branch
        %483 = sbr.rel (%p481) target = $region52
      $region51: #{tpu_custom_call.1} parent=5 // pred_region
        %s484 = ssub.s32 %s16, 2
        // Predicated region
        $region53: #{tpu_custom_call.1} parent=51 // pred_check
          %p485 = pneg %p113
        $region54: #{tpu_custom_call.1} parent=51 // pred_check_branch
          %487 = sbr.rel (%p485) target = $region56
        $region55: #{tpu_custom_call.1} parent=51 // pred_region
          %s488 = sand.u32 %s98, 1
          %s489 = scalar_lea.sflag [#allocation4], %s488
          %s490 = sand.u32 %s98, 1
          %s491 = smul.addr %s490, 128
          %s492 = scalar_lea.vmem [#allocation8], %s491
          %493 = dma.done %s489, 2048
        $region56: #{tpu_custom_call.1} parent=51 // pred_fallthru
          _
      $region52: #{tpu_custom_call.1} parent=5 // pred_fallthru
        _
    $region6: #{tpu_custom_call.1} parent=1 // loop_footer
      %s20 = sadd.s32 1, %s16
    $region7: #{tpu_custom_call.1} parent=1 // loop_footer_branch
      %15 = sbr.rel target = $region3
    $region8: #{tpu_custom_call.1} parent=1 // loop_exit
      _
    %494 = vsyncpa [#allocation3], 1
    %s495 = scalar_lea.sflag [#allocation3], 1
    %496 = vsyncpa %s495, 1
    %497 = vsyncpa [#allocation6], 1
    %498 = vsyncpa [#allocation4], 1
    %s499 = scalar_lea.sflag [#allocation4], 1
    %500 = vsyncpa %s499, 1

</llo_original>
